<compile_context>
chip_gen: v7x
topology: tpu7x:2x2x1
jax: 0.10.0
libtpu: 0.0.40
codegen_flags: <defaults>
</compile_context>

<pallas_src>
import functools

import jax
import jax.numpy as jnp
from jax.experimental import pallas as pl
from jax.experimental.pallas import tpu as pltpu

_EPS = 1e-6  # matches torch.nn.functional.pairwise_distance default eps


def _triplet_kernel(a_ref, p_ref, n_ref, o_ref, *,
                    margin: float, batch: int, tile_b: int,
                    tiles_per_partial: int, needs_mask: bool):
    c = pl.program_id(0)   # partial-sum slice ("parallel"; 2 TCs on v7x)
    i = pl.program_id(1)   # batch tile within the slice ("arbitrary")

    @pl.when(i == 0)
    def _init():
        # Output block for slice c is resident across the whole i axis.
        o_ref[...] = jnp.zeros_like(o_ref)

    a = a_ref[...].astype(jnp.float32)
    p = p_ref[...].astype(jnp.float32)
    n = n_ref[...].astype(jnp.float32)

    # F.pairwise_distance: ||x1 - x2 + eps||_2 along the feature axis.
    # Shared eps add: (a - p) + eps == (a + eps) - p.
    ae = a + _EPS
    dp = ae - p
    dn = ae - n
    pos_dist = jnp.sqrt(jnp.sum(dp * dp, axis=-1, keepdims=True))   # (tile_b, 1)
    neg_dist = jnp.sqrt(jnp.sum(dn * dn, axis=-1, keepdims=True))   # (tile_b, 1)

    loss = jnp.maximum(pos_dist - neg_dist + margin, 0.0)            # (tile_b, 1)

    if needs_mask:
        # Zero padded rows of ragged / phantom tiles (else each padded row
        # would add relu(0 - 0 + margin) = margin; jnp.where selects, so any
        # NaN/Inf from garbage padding is also suppressed).
        t = c * tiles_per_partial + i
        row = jax.lax.broadcasted_iota(jnp.int32, loss.shape, 0) + t * tile_b
        loss = jnp.where(row < batch, loss, 0.0)

    # Accumulate directly into the resident output block (scalar broadcast).
    o_ref[...] = o_ref[...] + jnp.sum(loss)


def _device_defaults():
    """(tile VMEM budget, vmem_limit_bytes or None, default num_partials)."""
    kind = ""
    try:
        kind = jax.devices()[0].device_kind.lower()
    except Exception:
        pass
    if "v7" in kind:
        # 64 MiB VMEM per TC; leave room for double-buffering + f32 temps.
        return 28 << 20, 48 << 20, 2
    if "v6" in kind:
        # 128 MiB physical VMEM; raise the 32 MiB scoped default.
        return 48 << 20, 96 << 20, 1
    # v5e (16 MiB scoped default) / unknown: stay conservative.
    return 12 << 20, None, 1


def _pick_tile_b(B: int, D: int, in_itemsize: int, budget_bytes: int) -> int:
    """Largest batch tile whose double-buffered inputs plus f32 intermediates
    fit the per-generation VMEM budget (no artificial row cap)."""
    # 3 inputs x 2 pipeline buffers + ~5 full-tile f32 intermediates headroom.
    per_row_bytes = 3 * 2 * D * in_itemsize + 5 * D * 4
    max_tile = max(8, budget_bytes // per_row_bytes)
    max_tile = (max_tile // 8) * 8
    return B if B <= max_tile else max_tile


def triplet_loss(anchor: jax.Array,
                 positive: jax.Array,
                 negative: jax.Array,
                 margin: float = 1.0,
                 *,
                 tile_b: int | None = None,
                 num_partials: int | None = None,
                 cast_to_bf16: bool = False) -> jax.Array:
    """Pallas TPU implementation of TripletLoss.forward. Returns a scalar."""
    assert anchor.shape == positive.shape == negative.shape
    assert anchor.ndim == 2, "expected (B, D) feature matrices"
    B, D = anchor.shape

    if cast_to_bf16 and anchor.dtype == jnp.float32:
        # Halves HBM traffic; kernel upcasts to f32 internally.
        anchor = anchor.astype(jnp.bfloat16)
        positive = positive.astype(jnp.bfloat16)
        negative = negative.astype(jnp.bfloat16)

    itemsize = jnp.dtype(anchor.dtype).itemsize
    budget_bytes, vmem_limit, default_partials = _device_defaults()
    if num_partials is None:
        num_partials = default_partials

    explicit_tile = tile_b is not None
    if tile_b is None:
        tile_b = _pick_tile_b(B, D, itemsize, budget_bytes)
    if num_partials > 1 and not explicit_tile:
        # Make sure each partial-sum slice gets work.
        per_part = -(-B // num_partials)
        per_part = max(8, ((per_part + 7) // 8) * 8)
        tile_b = min(tile_b, per_part)
    tile_b = min(tile_b, B)

    total_tiles = pl.cdiv(B, tile_b)
    num_partials = max(1, min(num_partials, total_tiles))
    tiles_per_partial = pl.cdiv(total_tiles, num_partials)
    # True if padded rows exist (ragged last tile and/or phantom tiles from
    # the partial-sum split).
    needs_mask = (num_partials * tiles_per_partial * tile_b) != B
    has_phantom = (num_partials * tiles_per_partial) > total_tiles
    last_tile = total_tiles - 1

    if has_phantom:
        def in_map(c, i):
            # Clamp fully-out-of-range tiles onto the last real tile; their
            # contribution is zeroed by the row mask in the kernel.
            return (jnp.minimum(c * tiles_per_partial + i, last_tile), 0)
    else:
        def in_map(c, i):
            return (c * tiles_per_partial + i, 0)

    kernel = functools.partial(
        _triplet_kernel, margin=float(margin), batch=B, tile_b=tile_b,
        tiles_per_partial=tiles_per_partial, needs_mask=needs_mask)

    cp_kwargs = dict(dimension_semantics=("parallel", "arbitrary"))
    if vmem_limit is not None:
        cp_kwargs["vmem_limit_bytes"] = int(vmem_limit)

    cost = pl.CostEstimate(
        flops=10 * B * D,
        transcendentals=2 * B,
        bytes_accessed=3 * B * D * itemsize + num_partials * 8 * 128 * 4,
    )

    out = pl.pallas_call(
        kernel,
        # One lane-dense (8, 128) accumulator block per partial-sum slice.
        out_shape=jax.ShapeDtypeStruct((8 * num_partials, 128), jnp.float32),
        grid_spec=pltpu.PrefetchScalarGridSpec(
            num_scalar_prefetch=0,
            grid=(num_partials, tiles_per_partial),
            in_specs=[
                pl.BlockSpec((tile_b, D), in_map),
                pl.BlockSpec((tile_b, D), in_map),
                pl.BlockSpec((tile_b, D), in_map),
            ],
            out_specs=pl.BlockSpec((8, 128), lambda c, i: (c, 0)),
        ),
        compiler_params=pltpu.CompilerParams(**cp_kwargs),
        cost_estimate=cost,
    )(anchor, positive, negative)

    # Every element of slice c's block holds that slice's partial sum.
    partials = out[0::8, 0]
    return (jnp.sum(partials) / B).astype(jnp.float32)


def _reference(anchor, positive, negative, margin=1.0):
    a = anchor.astype(jnp.float32)
    p = positive.astype(jnp.float32)
    n = negative.astype(jnp.float32)
    pos = jnp.sqrt(jnp.sum((a - p + _EPS) ** 2, axis=-1))
    neg = jnp.sqrt(jnp.sum((a - n + _EPS) ** 2, axis=-1))
    return jnp.mean(jnp.maximum(pos - neg + margin, 0.0))


if __name__ == "__main__":
    key = jax.random.PRNGKey(0)
    k1, k2, k3 = jax.random.split(key, 3)
    B, D = 20, 128  # small batch of D-dim embeddings (lane-aligned last dim)

    anchor = jax.random.normal(k1, (B, D), dtype=jnp.float32)
    positive = jax.random.normal(k2, (B, D), dtype=jnp.float32)
    negative = jax.random.normal(k3, (B, D), dtype=jnp.float32)

    ref = _reference(anchor, positive, negative, margin=1.0)

    # 1) Auto config (single resident tile for this small problem; on v7x the
    #    batch is split across two partial-sum slices automatically).
    loss = triplet_loss(anchor, positive, negative, margin=1.0)
    jax.block_until_ready(loss)
    assert jnp.allclose(loss, ref, rtol=1e-5, atol=1e-5), (loss, ref)

    # 2) Forced small tile, one partial: pipelined grid + ragged last tile
    #    (B=20, tile_b=8 -> 3 grid steps, last tile has 4 valid rows).
    loss2 = triplet_loss(anchor, positive, negative, margin=1.0,
                         tile_b=8, num_partials=1)
    jax.block_until_ready(loss2)
    assert jnp.allclose(loss2, ref, rtol=1e-5, atol=1e-5), (loss2, ref)

    # 3) Forced small tile, two partial-sum slices (v7x-style 2-core split):
    #    exercises per-slice accumulators plus a fully-out-of-range phantom
    #    tile (clamped index_map + row mask).
    loss3 = triplet_loss(anchor, positive, negative, margin=1.0,
                         tile_b=8, num_partials=2)
    jax.block_until_ready(loss3)
    assert jnp.allclose(loss3, ref, rtol=1e-5, atol=1e-5), (loss3, ref)

    # 4) bf16 input path (halves HBM bytes); compare against a reference that
    #    also quantizes inputs to bf16 before the f32 distance.
    ref_bf16 = _reference(anchor.astype(jnp.bfloat16),
                          positive.astype(jnp.bfloat16),
                          negative.astype(jnp.bfloat16), margin=1.0)
    loss4 = triplet_loss(anchor, positive, negative, margin=1.0,
                         cast_to_bf16=True)
    jax.block_until_ready(loss4)
    assert jnp.allclose(loss4, ref_bf16, rtol=2e-2, atol=2e-2), (loss4, ref_bf16)

    print("KERNEL_OK")
</pallas_src>

<mosaic_0001>
module attributes {stable_mosaic.version = 11 : i64} {
  func.func @_triplet_kernel(%arg0: i32, %arg1: i32, %arg2: memref<20x128xf32, #tpu.memory_space<vmem>>, %arg3: memref<20x128xf32, #tpu.memory_space<vmem>>, %arg4: memref<20x128xf32, #tpu.memory_space<vmem>>, %arg5: memref<8x128xf32, #tpu.memory_space<vmem>>) attributes {dimension_semantics = [#tpu.dimension_semantics<parallel>, #tpu.dimension_semantics<arbitrary>], iteration_bounds = array<i64: 1, 1>, scalar_prefetch = 0 : i64, scratch_operands = 0 : i64, tpu.core_type = #tpu.core_type<tc>, window_params = [{transform_indices = @transform_0, window_bounds = array<i64: 20, 128>}, {transform_indices = @transform_1, window_bounds = array<i64: 20, 128>}, {transform_indices = @transform_2, window_bounds = array<i64: 20, 128>}, {transform_indices = @transform_3, window_bounds = array<i64: 8, 128>}]} {
    %c0_i32 = arith.constant 0 : i32
    %0 = arith.cmpi eq, %arg1, %c0_i32 : i32
    %1 = arith.extui %0 : i1 to i32
    %c0_i32_0 = arith.constant 0 : i32
    %2 = arith.cmpi ne, %1, %c0_i32_0 : i32
    scf.if %2 {
      %cst_15 = arith.constant 0.000000e+00 : f32
      %31 = vector.broadcast %cst_15 : f32 to vector<8x128xf32>
      %c0_16 = arith.constant 0 : index
      %c0_17 = arith.constant 0 : index
      %32 = vector.load %arg5[%c0_16, %c0_17] : memref<8x128xf32, #tpu.memory_space<vmem>>, vector<8x128xf32>
      tpu.vector_store %arg5[%c0_16, %c0_17], %31 {strides = array<i32>} : memref<8x128xf32, #tpu.memory_space<vmem>>, vector<8x128xf32>,
    } else {
    }
    %c0 = arith.constant 0 : index
    %c0_1 = arith.constant 0 : index
    %3 = vector.load %arg2[%c0, %c0_1] : memref<20x128xf32, #tpu.memory_space<vmem>>, vector<20x128xf32>
    %c0_2 = arith.constant 0 : index
    %c0_3 = arith.constant 0 : index
    %4 = vector.load %arg3[%c0_2, %c0_3] : memref<20x128xf32, #tpu.memory_space<vmem>>, vector<20x128xf32>
    %c0_4 = arith.constant 0 : index
    %c0_5 = arith.constant 0 : index
    %5 = vector.load %arg4[%c0_4, %c0_5] : memref<20x128xf32, #tpu.memory_space<vmem>>, vector<20x128xf32>
    %cst = arith.constant 9.99999997E-7 : f32
    %6 = vector.broadcast %cst : f32 to vector<20x128xf32>
    %7 = arith.addf %3, %6 : vector<20x128xf32>
    %8 = arith.subf %7, %4 : vector<20x128xf32>
    %9 = arith.subf %7, %5 : vector<20x128xf32>
    %10 = arith.mulf %8, %8 : vector<20x128xf32>
    %cst_6 = arith.constant dense<0.000000e+00> : vector<20xf32>
    %11 = vector.multi_reduction <add>, %10, %cst_6 [1] : vector<20x128xf32> to vector<20xf32>
    %12 = vector.shape_cast %11 : vector<20xf32> to vector<20x1xf32>
    %13 = math.sqrt %12 : vector<20x1xf32>
    %14 = arith.mulf %9, %9 : vector<20x128xf32>
    %cst_7 = arith.constant dense<0.000000e+00> : vector<20xf32>
    %15 = vector.multi_reduction <add>, %14, %cst_7 [1] : vector<20x128xf32> to vector<20xf32>
    %16 = vector.shape_cast %15 : vector<20xf32> to vector<20x1xf32>
    %17 = math.sqrt %16 : vector<20x1xf32>
    %18 = arith.subf %13, %17 : vector<20x1xf32>
    %cst_8 = arith.constant 1.000000e+00 : f32
    %19 = vector.broadcast %cst_8 : f32 to vector<20x1xf32>
    %20 = arith.addf %18, %19 : vector<20x1xf32>
    %cst_9 = arith.constant 0.000000e+00 : f32
    %21 = vector.broadcast %cst_9 : f32 to vector<20x1xf32>
    %22 = arith.maximumf %20, %21 : vector<20x1xf32>
    %c0_10 = arith.constant 0 : index
    %c0_11 = arith.constant 0 : index
    %23 = vector.load %arg5[%c0_10, %c0_11] : memref<8x128xf32, #tpu.memory_space<vmem>>, vector<8x128xf32>
    %24 = vector.shape_cast %22 : vector<20x1xf32> to vector<1x20x1xf32>
    %cst_12 = arith.constant dense<0.000000e+00> : vector<1xf32>
    %25 = vector.multi_reduction <add>, %24, %cst_12 [1, 2] : vector<1x20x1xf32> to vector<1xf32>
    %26 = vector.shape_cast %25 : vector<1xf32> to vector<1x1x1xf32>
    %27 = vector.extract %26[0, 0, 0] : f32 from vector<1x1x1xf32>
    %28 = vector.broadcast %27 : f32 to vector<8x128xf32>
    %29 = arith.addf %23, %28 : vector<8x128xf32>
    %c0_13 = arith.constant 0 : index
    %c0_14 = arith.constant 0 : index
    %30 = vector.load %arg5[%c0_13, %c0_14] : memref<8x128xf32, #tpu.memory_space<vmem>>, vector<8x128xf32>
    tpu.vector_store %arg5[%c0_13, %c0_14], %29 {strides = array<i32>} : memref<8x128xf32, #tpu.memory_space<vmem>>, vector<8x128xf32>,
    return
  }
  func.func @transform_0(%arg0: i32, %arg1: i32) -> (i32, i32) {
    %c1_i32 = arith.constant 1 : i32
    %0 = arith.muli %arg0, %c1_i32 : i32
    %1 = arith.addi %0, %arg1 : i32
    %c0_i32 = arith.constant 0 : i32
    %c0_i32_0 = arith.constant 0 : i32
    return %1, %c0_i32 : i32, i32
  }
  func.func @transform_1(%arg0: i32, %arg1: i32) -> (i32, i32) {
    %c1_i32 = arith.constant 1 : i32
    %0 = arith.muli %arg0, %c1_i32 : i32
    %1 = arith.addi %0, %arg1 : i32
    %c0_i32 = arith.constant 0 : i32
    %c0_i32_0 = arith.constant 0 : i32
    return %1, %c0_i32 : i32, i32
  }
  func.func @transform_2(%arg0: i32, %arg1: i32) -> (i32, i32) {
    %c1_i32 = arith.constant 1 : i32
    %0 = arith.muli %arg0, %c1_i32 : i32
    %1 = arith.addi %0, %arg1 : i32
    %c0_i32 = arith.constant 0 : i32
    %c0_i32_0 = arith.constant 0 : i32
    return %1, %c0_i32 : i32, i32
  }
  func.func @transform_3(%arg0: i32, %arg1: i32) -> (i32, i32) {
    %c0_i32 = arith.constant 0 : i32
    %c0_i32_0 = arith.constant 0 : i32
    return %arg0, %c0_i32 : i32, i32
  }
}

</mosaic_0001>

<llo_original>
// kernel: tpu_custom_call.1
$region0: #{tpu_custom_call.1}
  #allocation0 [shape = 'u32[]', space=smem, size = 0x4, offset = 0x4, fixed_abs, tag = 'smem constant byte address 0x4 - core index']
  #allocation1 [shape = 'u32[144,128]{1,0:T(1,128)}', space=vmem, size = 0x12000, scoped, tag = 'internal scratch']
  %s0 = inlined_call_operand.hbm [shape: f32[20,128], index: 0, kind: input, shape index: {}]
  %s1 = inlined_call_operand.hbm [shape: f32[20,128], index: 1, kind: input, shape index: {}]
  %s2 = inlined_call_operand.hbm [shape: f32[20,128], index: 2, kind: input, shape index: {}]
  %s3 = inlined_call_operand.hbm [shape: f32[8,128], index: 3, kind: output, shape index: {}]
  %s4 = sld [smem:[#allocation0]]
  $region38: #{tpu_custom_call.1} parent=0
    _
  %s6 = ssub.s32 1, %s4
  %s7 = scalar_select 0, %s6, %s4
  $region1: #{tpu_custom_call.1} parent=0
    #allocation2 [shape = 'u8[12288]{0}', space=vmem, size = 0x3000, scoped, tag = 'input window, operand 0, single buffered']
    #allocation3 [shape = 's32[1]{0}', space=sflag, size = 0x4, scoped, tag = 'scoped memory for tpu_custom_call.1']
    #allocation4 [shape = 's32[1]{0}', space=sflag, size = 0x4, scoped, tag = 'scoped memory for tpu_custom_call.1']
    #allocation5 [shape = 'u8[12288]{0}', space=vmem, size = 0x3000, scoped, tag = 'input window, operand 1, single buffered']
    #allocation6 [shape = 's32[1]{0}', space=sflag, size = 0x4, scoped, tag = 'scoped memory for tpu_custom_call.1']
    #allocation7 [shape = 'u8[12288]{0}', space=vmem, size = 0x3000, scoped, tag = 'input window, operand 2, single buffered']
    #allocation8 [shape = 'u8[4096]{0}', space=vmem, size = 0x1000, scoped, tag = 'output window, operand 0, single buffered']
    %8 = vsyncpa [#allocation3], 0
    %9 = vsyncpa [#allocation6], 0
    %10 = vsyncpa [#allocation4], 0
    // Predicated region
    $region2: #{tpu_custom_call.1} parent=1 // pred_check
      _
    $region3: #{tpu_custom_call.1} parent=1 // pred_check_branch
      %12 = sbr.rel (0) target = $region5
    $region4: #{tpu_custom_call.1} parent=1 // pred_region
      %s13 = sadd.s32 0, 0
      %s14 = smul.u32 3, %s13
      %s16 = ssub.s32 384, 384
      %17 = vsyncadd [#allocation3], %s16
      %s18 = smul.addr %s14, 128
      %s19 = scalar_lea.hbm %s0, %s18
      %s20 = sshll.u32 [#allocation2], 4
      %s21 = int_to_ptr.vmem [resolvable:$true] %s20
      %26 = dma.hbm_to_vmem [thread:$0]  %s19, 384, %s21, [#allocation3], 128, 128, 8
    $region5: #{tpu_custom_call.1} parent=1 // pred_fallthru
      _
    // Predicated region
    $region6: #{tpu_custom_call.1} parent=1 // pred_check
      _
    $region7: #{tpu_custom_call.1} parent=1 // pred_check_branch
      %28 = sbr.rel (0) target = $region9
    $region8: #{tpu_custom_call.1} parent=1 // pred_region
      %s29 = sadd.s32 0, 0
      %s30 = smul.u32 3, %s29
      %s32 = ssub.s32 384, 384
      %33 = vsyncadd [#allocation6], %s32
      %s34 = smul.addr %s30, 128
      %s35 = scalar_lea.hbm %s1, %s34
      %s36 = sshll.u32 [#allocation5], 4
      %s37 = int_to_ptr.vmem [resolvable:$true] %s36
      %42 = dma.hbm_to_vmem [thread:$0]  %s35, 384, %s37, [#allocation6], 128, 128, 8
    $region9: #{tpu_custom_call.1} parent=1 // pred_fallthru
      _
    // Predicated region
    $region10: #{tpu_custom_call.1} parent=1 // pred_check
      _
    $region11: #{tpu_custom_call.1} parent=1 // pred_check_branch
      %44 = sbr.rel (0) target = $region13
    $region12: #{tpu_custom_call.1} parent=1 // pred_region
      %s45 = sadd.s32 0, 0
      %s46 = smul.u32 3, %s45
      %s48 = ssub.s32 384, 384
      %49 = vsyncadd [#allocation6], %s48
      %s50 = smul.addr %s46, 128
      %s51 = scalar_lea.hbm %s2, %s50
      %s52 = sshll.u32 [#allocation7], 4
      %s53 = int_to_ptr.vmem [resolvable:$true] %s52
      %58 = dma.hbm_to_vmem [thread:$0]  %s51, 384, %s53, [#allocation6], 128, 128, 8
    $region13: #{tpu_custom_call.1} parent=1 // pred_fallthru
      _
    // Predicated region
    $region14: #{tpu_custom_call.1} parent=1 // pred_check
      _
    $region15: #{tpu_custom_call.1} parent=1 // pred_check_branch
      %60 = sbr.rel (0) target = $region17
    $region16: #{tpu_custom_call.1} parent=1 // pred_region
      %61 = dma.done [#allocation3], 384
    $region17: #{tpu_custom_call.1} parent=1 // pred_fallthru
      _
    // Predicated region
    $region18: #{tpu_custom_call.1} parent=1 // pred_check
      _
    $region19: #{tpu_custom_call.1} parent=1 // pred_check_branch
      %63 = sbr.rel (0) target = $region21
    $region20: #{tpu_custom_call.1} parent=1 // pred_region
      %64 = dma.done [#allocation6], 384
    $region21: #{tpu_custom_call.1} parent=1 // pred_fallthru
      _
    // Predicated region
    $region22: #{tpu_custom_call.1} parent=1 // pred_check
      _
    $region23: #{tpu_custom_call.1} parent=1 // pred_check_branch
      %66 = sbr.rel (0) target = $region25
    $region24: #{tpu_custom_call.1} parent=1 // pred_region
      %67 = dma.done [#allocation6], 384
    $region25: #{tpu_custom_call.1} parent=1 // pred_fallthru
      _
    %s68 = sadd.s32 0, 0
    %s69 = smul.u32 3, %s68
    %s70 = sadd.s32 0, 0
    %s71 = smul.u32 3, %s70
    %s72 = sadd.s32 0, 0
    %s73 = smul.u32 3, %s72
    %p74 = scmp.eq.s32.totalorder 0, 0
    // Predicated region
    $region26: #{tpu_custom_call.1} parent=1 // pred_check
      %p75 = pneg %p74
    $region27: #{tpu_custom_call.1} parent=1 // pred_check_branch
      %77 = sbr.rel (%p75) target = $region29
    $region28: #{tpu_custom_call.1} parent=1 // pred_region
      %78 = vst [vmem:[#allocation8] sm:$0xff] 0.0
    $region29: #{tpu_custom_call.1} parent=1 // pred_fallthru
      _
    %v79 = vld [vmem:[#allocation2] sm:$0xff]
    %v80 = vld [vmem:[#allocation2 + $0x8] sm:$0xff]
    %v81 = vld [vmem:[#allocation2 + $0x10] sm:$0xf]
    %v82 = vld [vmem:[#allocation5] sm:$0xff]
    %v83 = vld [vmem:[#allocation5 + $0x8] sm:$0xff]
    %v84 = vld [vmem:[#allocation5 + $0x10] sm:$0xf]
    %v85 = vld [vmem:[#allocation7] sm:$0xff]
    %v86 = vld [vmem:[#allocation7 + $0x8] sm:$0xff]
    %v87 = vld [vmem:[#allocation7 + $0x10] sm:$0xf]
    %v88 = vadd.f32 %v79, 1e-06
    %v89 = vadd.f32 %v80, 1e-06
    %v90 = vadd.f32 %v81, 1e-06
    %v91 = vsub.f32 %v88, %v82
    %v92 = vsub.f32 %v89, %v83
    %v93 = vsub.f32 %v90, %v84
    %v94 = vsub.f32 %v88, %v85
    %v95 = vsub.f32 %v89, %v86
    %v96 = vsub.f32 %v90, %v87
    %v97 = vmul.f32 %v91, %v91
    %v98 = vmul.f32 %v92, %v92
    %v99 = vmul.f32 %v93, %v93
    %100 = vadd.xlane.f32.xlu0 %v97
    %v101 = vpop.xlane.xlu0 %100
    %102 = vadd.xlane.f32.xlu0 %v98
    %v103 = vpop.xlane.xlu0 %102
    %vm104 = vcmask 1043456
    %v105 = vsel %vm104, %v99, 0.0
    %106 = vadd.xlane.f32.xlu0 %v105
    %v107 = vpop.xlane.xlu0 %106
    %v108 = vrsqrt.pop %v101
    %v109 = vmul.f32 %v101, %v108
    %vm110 = vcmp.eq.f32.partialorder %v101, inf
    %v111 = vsel %vm110, %v101, %v109
    %vm112 = vcmp.eq.f32.partialorder %v101, 0.0
    %v113 = vand.u32 %v101, 2147483648
    %v114 = vsel %vm112, %v113, %v111
    %v115 = vrsqrt.pop %v103
    %v116 = vmul.f32 %v103, %v115
    %vm117 = vcmp.eq.f32.partialorder %v103, inf
    %v118 = vsel %vm117, %v103, %v116
    %vm119 = vcmp.eq.f32.partialorder %v103, 0.0
    %v120 = vand.u32 %v103, 2147483648
    %v121 = vsel %vm119, %v120, %v118
    %v122 = vrsqrt.pop %v107
    %v123 = vmul.f32 %v107, %v122
    %vm124 = vcmp.eq.f32.partialorder %v107, inf
    %v125 = vsel %vm124, %v107, %v123
    %vm126 = vcmp.eq.f32.partialorder %v107, 0.0
    %v127 = vand.u32 %v107, 2147483648
    %v128 = vsel %vm126, %v127, %v125
    %v129 = vmul.f32 %v94, %v94
    %v130 = vmul.f32 %v95, %v95
    %v131 = vmul.f32 %v96, %v96
    %132 = vadd.xlane.f32.xlu0 %v129
    %v133 = vpop.xlane.xlu0 %132
    %134 = vadd.xlane.f32.xlu0 %v130
    %v135 = vpop.xlane.xlu0 %134
    %v136 = vsel %vm104, %v131, 0.0
    %137 = vadd.xlane.f32.xlu0 %v136
    %v138 = vpop.xlane.xlu0 %137
    %v139 = vrsqrt.pop %v133
    %v140 = vmul.f32 %v133, %v139
    %vm141 = vcmp.eq.f32.partialorder %v133, inf
    %v142 = vsel %vm141, %v133, %v140
    %vm143 = vcmp.eq.f32.partialorder %v133, 0.0
    %v144 = vand.u32 %v133, 2147483648
    %v145 = vsel %vm143, %v144, %v142
    %v146 = vrsqrt.pop %v135
    %v147 = vmul.f32 %v135, %v146
    %vm148 = vcmp.eq.f32.partialorder %v135, inf
    %v149 = vsel %vm148, %v135, %v147
    %vm150 = vcmp.eq.f32.partialorder %v135, 0.0
    %v151 = vand.u32 %v135, 2147483648
    %v152 = vsel %vm150, %v151, %v149
    %v153 = vrsqrt.pop %v138
    %v154 = vmul.f32 %v138, %v153
    %vm155 = vcmp.eq.f32.partialorder %v138, inf
    %v156 = vsel %vm155, %v138, %v154
    %vm157 = vcmp.eq.f32.partialorder %v138, 0.0
    %v158 = vand.u32 %v138, 2147483648
    %v159 = vsel %vm157, %v158, %v156
    %v160 = vsub.f32 %v114, %v145
    %v161 = vsub.f32 %v121, %v152
    %v162 = vsub.f32 %v128, %v159
    %v163 = vadd.f32 %v160, 1.0
    %v164 = vadd.f32 %v161, 1.0
    %v165 = vadd.f32 %v162, 1.0
    %v166 = vmax.f32 %v163, 0.0
    %v167 = vmax.f32 %v164, 0.0
    %v168 = vmax.f32 %v165, 0.0
    %v169 = vld [vmem:[#allocation8] sm:$0xff]
    %vm170 = vcmask 7168
    %v171 = vsel %vm170, %v166, 0.0
    %v172 = vsel %vm170, %v167, 0.0
    %v173 = vadd.f32 %v171, %v172
    %vm174 = vcmask 3072
    %v175 = vsel %vm174, %v168, 0.0
    %v176 = vadd.f32 %v173, %v175
    %177 = vadd.xlane.f32.xlu0 %v176
    %v178 = vpop.xlane.xlu0 %177
    %v179 = vrot.slane %v178, 4
    %v180 = vadd.f32 %v178, %v179
    %v181 = vrot.slane %v180, 2
    %v182 = vadd.f32 %v180, %v181
    %v183 = vrot.slane %v182, 1
    %v184 = vadd.f32 %v182, %v183
    %s185 = vtos %v184
    %v186 = vstv %s185
    %v187 = vadd.f32 %v169, %v186
    %188 = vst [vmem:[#allocation8] sm:$0xff] %v187
    // Predicated region
    $region30: #{tpu_custom_call.1} parent=1 // pred_check
      _
    $region31: #{tpu_custom_call.1} parent=1 // pred_check_branch
      %190 = sbr.rel (0) target = $region33
    $region32: #{tpu_custom_call.1} parent=1 // pred_region
      %s192 = ssub.s32 128, 128
      %193 = vsyncadd [#allocation4], %s192
      %s195 = sshll.u32 [#allocation8], 4
      %s196 = int_to_ptr.vmem [resolvable:$true] %s195
      %198 = dma.vmem_to_hbm [thread:$0]  %s196, 128, %s3, [#allocation4]
    $region33: #{tpu_custom_call.1} parent=1 // pred_fallthru
      _
    // Predicated region
    $region34: #{tpu_custom_call.1} parent=1 // pred_check
      _
    $region35: #{tpu_custom_call.1} parent=1 // pred_check_branch
      %200 = sbr.rel (0) target = $region37
    $region36: #{tpu_custom_call.1} parent=1 // pred_region
      %201 = dma.done [#allocation4], 128
    $region37: #{tpu_custom_call.1} parent=1 // pred_fallthru
      _
    %202 = vsyncpa [#allocation3], 1
    %203 = vsyncpa [#allocation6], 1
    %204 = vsyncpa [#allocation4], 1

</llo_original>
